<compile_context>
chip_gen: v7x
topology: tpu7x:2x2x1
jax: 0.10.0
libtpu: 0.0.40
codegen_flags: <defaults>
</compile_context>

<pallas_src>
import jax
import jax.numpy as jnp
from jax.experimental import pallas as pl
from jax.experimental.pallas import tpu as pltpu

N = 100       # matches `x = torch.randn(100, 1)` in the reference script
LANES = 128   # vreg lane width; also the padded batch size


def linreg_kernel(x_ref, p_ref, o_ref):
    """x_ref: (1, Npad) VMEM lane-dense batch; p_ref: (8,) SMEM folded scalars;
    o_ref: (1, Npad) VMEM output.

    p_ref layout: [A, C, s0, t0, s1, t1, wf0, wf1] with
      out = A*x + C + wf0*relu(s0*x + t0) + wf1*relu(s1*x + t1)
    """
    x = x_ref[...]                                    # (1, Npad) single vreg

    A, C = p_ref[0], p_ref[1]
    s0, t0 = p_ref[2], p_ref[3]
    s1, t1 = p_ref[4], p_ref[5]
    wf0, wf1 = p_ref[6], p_ref[7]

    r0 = jnp.maximum(s0 * x + t0, 0.0)                # VPU scalar*vreg FMA + max
    r1 = jnp.maximum(s1 * x + t1, 0.0)
    o_ref[...] = (A * x + C + wf0 * r0 + wf1 * r1).astype(o_ref.dtype)


def fold_params(params):
    """Exact offline constant fold of the whole affine chain + final layer.

    Forward (layer-by-layer):
      h      = x*w_lin + b_lin
      prompt = h*w_prompt + b_prompt
      x1     = h*w_fc1 + b_fc1 + h                 (broadcast of h over 10 feats)
      x2     = x1 @ w_fc2 + b_fc2
      xr     = relu(x2 + prompt) + x2
      out    = xr @ w_final + b_final
    Folded (per element):
      out = A*x + C + wf0*relu(s0*x+t0) + wf1*relu(s1*x+t1)
    """
    (w_lin, b_lin, w_fc1, b_fc1, w_fc2, b_fc2,
     w_prompt, b_prompt, w_final, b_final) = params

    w_lin_s = w_lin[0, 0]
    b_lin_s = b_lin[0, 0]

    a_prompt = w_lin_s * w_prompt[0]                              # (2,)
    c_prompt = b_lin_s * w_prompt[0] + b_prompt[0]                # (2,)

    w_eff = ((w_fc1 + 1.0) @ w_fc2)[0]                            # (2,)
    a_x2 = w_lin_s * w_eff                                        # (2,)
    c_x2 = b_lin_s * w_eff + (b_fc1 @ w_fc2)[0] + b_fc2[0]        # (2,)

    s = a_x2 + a_prompt                                           # (2,) relu slopes
    t = c_x2 + c_prompt                                           # (2,) relu offsets
    wf = w_final[:, 0]                                            # (2,)

    A = jnp.dot(wf, a_x2)                                         # linear part
    C = jnp.dot(wf, c_x2) + b_final[0, 0]

    return jnp.stack([A, C, s[0], t[0], s[1], t[1], wf[0], wf[1]]
                     ).astype(jnp.float32)                        # (8,) SMEM scalars


def linear_regression_forward(x, folded_params):
    """x: (n, 1) float; folded_params: (8,) f32 from fold_params()."""
    n = x.shape[0]
    n_pad = ((n + LANES - 1) // LANES) * LANES

    # Lane-dense layout: batch on the lane axis -> one dense vreg per 128 rows.
    x_row = jnp.zeros((1, n_pad), jnp.float32).at[0, :n].set(
        x[:, 0].astype(jnp.float32))

    vmem = pl.BlockSpec(memory_space=pltpu.MemorySpace.VMEM)
    smem = pl.BlockSpec(memory_space=pltpu.MemorySpace.SMEM)

    out_row = pl.pallas_call(
        linreg_kernel,
        out_shape=jax.ShapeDtypeStruct((1, n_pad), jnp.float32),
        in_specs=[vmem, smem],
        out_specs=vmem,
        cost_estimate=pl.CostEstimate(
            flops=10 * n_pad,
            transcendentals=0,
            bytes_accessed=4 * (2 * n_pad + 8)),
    )(x_row, folded_params)

    return out_row[0, :n].reshape(n, 1)


def init_params(key):
    """Deterministic init mimicking nn.Linear's U(-1/sqrt(fan_in), 1/sqrt(fan_in)).

    Weights stored as (in_features, out_features); biases as (1, out_features).
    """
    def linear_init(k, fan_in, fan_out):
        kw, kb = jax.random.split(k)
        bound = 1.0 / jnp.sqrt(float(fan_in))
        w = jax.random.uniform(kw, (fan_in, fan_out), jnp.float32, -bound, bound)
        b = jax.random.uniform(kb, (1, fan_out), jnp.float32, -bound, bound)
        return w, b

    k_lin, k_fc1, k_fc2, k_prompt, k_final = jax.random.split(key, 5)
    w_lin, b_lin = linear_init(k_lin, 1, 1)           # self.linear
    w_fc1, b_fc1 = linear_init(k_fc1, 1, 10)          # self.fc1
    w_fc2, b_fc2 = linear_init(k_fc2, 10, 2)          # self.fc2
    w_prompt, b_prompt = linear_init(k_prompt, 1, 2)  # self.prompt
    w_final, b_final = linear_init(k_final, 2, 1)     # self.final
    return (w_lin, b_lin, w_fc1, b_fc1, w_fc2, b_fc2,
            w_prompt, b_prompt, w_final, b_final)


def reference_forward(x, params):
    """Pure-JAX reference with the original (unfolded) layer-by-layer math."""
    (w_lin, b_lin, w_fc1, b_fc1, w_fc2, b_fc2,
     w_prompt, b_prompt, w_final, b_final) = params
    h = x @ w_lin + b_lin
    prompt = h @ w_prompt + b_prompt
    x1 = h @ w_fc1 + b_fc1 + h           # (N,10) + (N,1) broadcast, as in PyTorch
    x2 = x1 @ w_fc2 + b_fc2
    xr = x2 + prompt
    xr = jnp.maximum(xr, 0.0) + x2
    return xr @ w_final + b_final


if __name__ == "__main__":
    key = jax.random.PRNGKey(0)
    k_params, k_x = jax.random.split(key)

    params = init_params(k_params)
    x = jax.random.normal(k_x, (N, 1), dtype=jnp.float32)

    # Fold once, outside the per-call hot path.
    folded = jax.block_until_ready(fold_params(params))

    out = linear_regression_forward(x, folded)
    out = jax.block_until_ready(out)

    ref = reference_forward(x, params)
    assert out.shape == (N, 1)
    assert jnp.allclose(out, ref, atol=1e-5, rtol=1e-4)

    print("KERNEL_OK")
</pallas_src>

<mosaic_0001>
module attributes {stable_mosaic.version = 11 : i64} {
  func.func @linreg_kernel(%arg0: memref<1x128xf32, #tpu.memory_space<vmem>>, %arg1: memref<8xf32, #tpu.memory_space<smem>>, %arg2: memref<1x128xf32, #tpu.memory_space<vmem>>) attributes {dimension_semantics = [], scalar_prefetch = 0 : i64, scratch_operands = 0 : i64, tpu.core_type = #tpu.core_type<tc>} {
    %c0 = arith.constant 0 : index
    %c0_0 = arith.constant 0 : index
    %0 = vector.load %arg0[%c0, %c0_0] : memref<1x128xf32, #tpu.memory_space<vmem>>, vector<1x128xf32>
    %c0_1 = arith.constant 0 : index
    %1 = memref.load %arg1[%c0_1] : memref<8xf32, #tpu.memory_space<smem>>
    %c1 = arith.constant 1 : index
    %2 = memref.load %arg1[%c1] : memref<8xf32, #tpu.memory_space<smem>>
    %c2 = arith.constant 2 : index
    %3 = memref.load %arg1[%c2] : memref<8xf32, #tpu.memory_space<smem>>
    %c3 = arith.constant 3 : index
    %4 = memref.load %arg1[%c3] : memref<8xf32, #tpu.memory_space<smem>>
    %c4 = arith.constant 4 : index
    %5 = memref.load %arg1[%c4] : memref<8xf32, #tpu.memory_space<smem>>
    %c5 = arith.constant 5 : index
    %6 = memref.load %arg1[%c5] : memref<8xf32, #tpu.memory_space<smem>>
    %c6 = arith.constant 6 : index
    %7 = memref.load %arg1[%c6] : memref<8xf32, #tpu.memory_space<smem>>
    %c7 = arith.constant 7 : index
    %8 = memref.load %arg1[%c7] : memref<8xf32, #tpu.memory_space<smem>>
    %9 = vector.broadcast %3 : f32 to vector<1x128xf32>
    %10 = arith.mulf %9, %0 : vector<1x128xf32>
    %11 = vector.broadcast %4 : f32 to vector<1x128xf32>
    %12 = arith.addf %10, %11 : vector<1x128xf32>
    %cst = arith.constant 0.000000e+00 : f32
    %13 = vector.broadcast %cst : f32 to vector<1x128xf32>
    %14 = arith.maximumf %12, %13 : vector<1x128xf32>
    %15 = vector.broadcast %5 : f32 to vector<1x128xf32>
    %16 = arith.mulf %15, %0 : vector<1x128xf32>
    %17 = vector.broadcast %6 : f32 to vector<1x128xf32>
    %18 = arith.addf %16, %17 : vector<1x128xf32>
    %cst_2 = arith.constant 0.000000e+00 : f32
    %19 = vector.broadcast %cst_2 : f32 to vector<1x128xf32>
    %20 = arith.maximumf %18, %19 : vector<1x128xf32>
    %21 = vector.broadcast %1 : f32 to vector<1x128xf32>
    %22 = arith.mulf %21, %0 : vector<1x128xf32>
    %23 = vector.broadcast %2 : f32 to vector<1x128xf32>
    %24 = arith.addf %22, %23 : vector<1x128xf32>
    %25 = vector.broadcast %7 : f32 to vector<1x128xf32>
    %26 = arith.mulf %25, %14 : vector<1x128xf32>
    %27 = arith.addf %24, %26 : vector<1x128xf32>
    %28 = vector.broadcast %8 : f32 to vector<1x128xf32>
    %29 = arith.mulf %28, %20 : vector<1x128xf32>
    %30 = arith.addf %27, %29 : vector<1x128xf32>
    %c0_3 = arith.constant 0 : index
    %c0_4 = arith.constant 0 : index
    %31 = vector.load %arg2[%c0_3, %c0_4] : memref<1x128xf32, #tpu.memory_space<vmem>>, vector<1x128xf32>
    tpu.vector_store %arg2[%c0_3, %c0_4], %30 {strides = array<i32>} : memref<1x128xf32, #tpu.memory_space<vmem>>, vector<1x128xf32>,
    return
  }
}

</mosaic_0001>

<llo_original>
// kernel: tpu_custom_call.1
$region0: #{tpu_custom_call.1}
  #allocation0 [shape = 'u32[]', space=smem, size = 0x4, offset = 0x4, fixed_abs, tag = 'smem constant byte address 0x4 - core index']
  #allocation1 [shape = 'u32[144,128]{1,0:T(1,128)}', space=vmem, size = 0x12000, scoped, tag = 'internal scratch']
  %s0 = inlined_call_operand.hbm [shape: f32[1,128], index: 0, kind: input, shape index: {}]
  %s1 = inlined_call_operand.vmem [shape: f32[8], index: 1, kind: input, shape index: {}]
  %s2 = inlined_call_operand.hbm [shape: f32[1,128], index: 2, kind: output, shape index: {}]
  %s3 = sld [smem:[#allocation0]]
  $region26: #{tpu_custom_call.1} parent=0
    _
  %s5 = ssub.s32 1, %s3
  %s6 = scalar_select 0, %s5, %s3
  $region1: #{tpu_custom_call.1} parent=0
    #allocation2 [shape = 'u8[512]{0}', space=vmem, size = 0x400, scoped, tag = 'input window, operand 0, single buffered']
    #allocation3 [shape = 's32[1]{0}', space=sflag, size = 0x4, scoped, tag = 'scoped memory for tpu_custom_call.1']
    #allocation4 [shape = 's32[1]{0}', space=sflag, size = 0x4, scoped, tag = 'scoped memory for tpu_custom_call.1']
    #allocation5 [shape = 's32[1]{0}', space=sflag, size = 0x4, scoped, tag = 'scoped memory for tpu_custom_call.1']
    #allocation6 [shape = 'u8[512]{0}', space=smem, size = 0x200, scoped, tag = 'input window, operand 1, single buffered']
    #allocation7 [shape = 'u8[512]{0}', space=vmem, size = 0x400, scoped, tag = 'output window, operand 0, single buffered']
    %7 = vsyncpa [#allocation3], 0
    %8 = vsyncpa [#allocation5], 0
    %9 = vsyncpa [#allocation4], 0
    // Predicated region
    $region2: #{tpu_custom_call.1} parent=1 // pred_check
      _
    $region3: #{tpu_custom_call.1} parent=1 // pred_check_branch
      %11 = sbr.rel (0) target = $region5
    $region4: #{tpu_custom_call.1} parent=1 // pred_region
      %s13 = ssub.s32 16, 16
      %14 = vsyncadd [#allocation3], %s13
      %s16 = sshll.u32 [#allocation2], 4
      %s17 = int_to_ptr.vmem [resolvable:$true] %s16
      %19 = dma.hbm_to_vmem [thread:$0]  %s0, 16, %s17, [#allocation3]
    $region5: #{tpu_custom_call.1} parent=1 // pred_fallthru
      _
    // Predicated region
    $region6: #{tpu_custom_call.1} parent=1 // pred_check
      _
    $region7: #{tpu_custom_call.1} parent=1 // pred_check_branch
      %21 = sbr.rel (0) target = $region9
    $region8: #{tpu_custom_call.1} parent=1 // pred_region
      %s23 = ssub.s32 16, 16
      %24 = vsyncadd [#allocation5], %s23
      %s26 = sshll.u32 %s1, 4
      %s27 = int_to_ptr.vmem [resolvable:$true] %s26
      %29 = dma.vmem_to_smem %s27, 16, [#allocation6], [#allocation5]
    $region9: #{tpu_custom_call.1} parent=1 // pred_fallthru
      _
    // Predicated region
    $region10: #{tpu_custom_call.1} parent=1 // pred_check
      _
    $region11: #{tpu_custom_call.1} parent=1 // pred_check_branch
      %31 = sbr.rel (0) target = $region13
    $region12: #{tpu_custom_call.1} parent=1 // pred_region
      %32 = dma.done [#allocation3], 16
    $region13: #{tpu_custom_call.1} parent=1 // pred_fallthru
      _
    // Predicated region
    $region14: #{tpu_custom_call.1} parent=1 // pred_check
      _
    $region15: #{tpu_custom_call.1} parent=1 // pred_check_branch
      %34 = sbr.rel (0) target = $region17
    $region16: #{tpu_custom_call.1} parent=1 // pred_region
      %35 = dma.done [#allocation5], 16
    $region17: #{tpu_custom_call.1} parent=1 // pred_fallthru
      _
    %36 = sfence
    %v37 = vld [vmem:[#allocation2] sm:$0x1]
    %s38 = sld [smem:[#allocation6]]
    %s39 = sld [smem:[#allocation6 + $0x1]]
    %s40 = sld [smem:[#allocation6 + $0x2]]
    %s41 = sld [smem:[#allocation6 + $0x3]]
    %s42 = sld [smem:[#allocation6 + $0x4]]
    %s43 = sld [smem:[#allocation6 + $0x5]]
    %s44 = sld [smem:[#allocation6 + $0x6]]
    %s45 = sld [smem:[#allocation6 + $0x7]]
    %v46 = vstv %s40
    %v47 = vmul.f32 %v46, %v37
    %v48 = vstv %s41
    %v49 = vadd.f32 %v47, %v48
    %v50 = vmax.f32 %v49, 0.0
    %v51 = vstv %s42
    %v52 = vmul.f32 %v51, %v37
    %v53 = vstv %s43
    %v54 = vadd.f32 %v52, %v53
    %v55 = vmax.f32 %v54, 0.0
    %v56 = vstv %s38
    %v57 = vmul.f32 %v56, %v37
    %v58 = vstv %s39
    %v59 = vadd.f32 %v57, %v58
    %v60 = vstv %s44
    %v61 = vmul.f32 %v60, %v50
    %v62 = vadd.f32 %v59, %v61
    %v63 = vstv %s45
    %v64 = vmul.f32 %v63, %v55
    %v65 = vadd.f32 %v62, %v64
    %66 = vst [vmem:[#allocation7] sm:$0x1] %v65
    // Predicated region
    $region18: #{tpu_custom_call.1} parent=1 // pred_check
      _
    $region19: #{tpu_custom_call.1} parent=1 // pred_check_branch
      %68 = sbr.rel (0) target = $region21
    $region20: #{tpu_custom_call.1} parent=1 // pred_region
      %s70 = ssub.s32 16, 16
      %71 = vsyncadd [#allocation4], %s70
      %s73 = sshll.u32 [#allocation7], 4
      %s74 = int_to_ptr.vmem [resolvable:$true] %s73
      %76 = dma.vmem_to_hbm [thread:$0]  %s74, 16, %s2, [#allocation4]
    $region21: #{tpu_custom_call.1} parent=1 // pred_fallthru
      _
    // Predicated region
    $region22: #{tpu_custom_call.1} parent=1 // pred_check
      _
    $region23: #{tpu_custom_call.1} parent=1 // pred_check_branch
      %78 = sbr.rel (0) target = $region25
    $region24: #{tpu_custom_call.1} parent=1 // pred_region
      %79 = dma.done [#allocation4], 16
    $region25: #{tpu_custom_call.1} parent=1 // pred_fallthru
      _
    %80 = vsyncpa [#allocation3], 1
    %81 = vsyncpa [#allocation4], 1
    %82 = vsyncpa [#allocation5], 1

</llo_original>
